<compile_context>
chip_gen: v7x
topology: tpu7x:2x2x1
jax: 0.10.0
libtpu: 0.0.40
codegen_flags: <defaults>
</compile_context>

<pallas_src>
import jax
import jax.numpy as jnp
from jax.experimental import pallas as pl
from jax.experimental.pallas import tpu as pltpu

_LANE = 128
_SUBLANE = 8


def _round_up(v, m):
    return (v + m - 1) // m * m


# ----------------------------------------------------------------------------- kernel
def _bayes_linear_kernel(x_ref, mu_ref, rho_ref, mask_ref, eps_ref, b_ref, o_ref):
    """One (rows, tn) output block; grid = (out tiles j, in tiles k), k innermost."""
    k = pl.program_id(1)
    nk = pl.num_programs(1)

    # Sample this (tk, tn) weight tile: W = mu * mask + softplus(rho) * eps.
    # Elementwise math in f32 (v5e VPU/EUP have no bf16 path); params arrive as bf16.
    mu = mu_ref[...].astype(jnp.float32)
    mask = mask_ref[...].astype(jnp.float32)
    eps = eps_ref[...].astype(jnp.float32)
    sigma = jnp.logaddexp(rho_ref[...].astype(jnp.float32), 0.0)   # stable softplus (EUP)
    w = (mu * mask + sigma * eps).astype(jnp.bfloat16)             # MXU operand

    # bf16 x bf16 -> f32 accumulation on the MXU, lane-dense (rows, tn) result.
    part = jnp.dot(x_ref[...], w, preferred_element_type=jnp.float32)

    # o_ref's block index is k-invariant (resident in VMEM across the contraction):
    # accumulate into it directly; first partial is a plain store (no zero-fill).
    @pl.when(k == 0)
    def _():
        o_ref[...] = part

    @pl.when(k > 0)
    def _():
        o_ref[...] += part

    # Epilogue: sample the bias (rows 0..3 of the packed b block) and add it.
    @pl.when(k == nk - 1)
    def _():
        bias = (b_ref[0:1, :] * b_ref[2:3, :]
                + jnp.logaddexp(b_ref[1:2, :], 0.0) * b_ref[3:4, :])   # (1, tn)
        o_ref[...] += bias


# ----------------------------------------------------------------------------- wrapper
def prepare_linear_bayesian_params(mu_w, rho_w, mu_b, rho_b, *, tk=512, tn=512):
    """One-time (per optimizer step) repack of the learned parameters.

    mu_w/rho_w: (out_features, in_features), mu_b/rho_b: (out_features,) — PyTorch layout.
    Returns the transposed / padded / bf16-cast planes plus the tiling metadata. This is
    hoisted out of the per-sample forward so the (out,in)->(in,out) transpose+pad pass
    over the parameters is not repeated for every Bayesian sample.
    """
    out_f, in_f = mu_w.shape
    tk = min(_round_up(tk, _LANE), _round_up(in_f, _LANE))
    tn = min(_round_up(tn, _LANE), _round_up(out_f, _LANE))
    # Megacore (v7x): prefer >=2 output tiles so the "parallel" j axis can be sharded
    # across both TensorCores. (Neutral on single-TC v5e/v6e.)
    if out_f > _LANE and _round_up(out_f, _LANE) <= tn:
        tn = max(_LANE, _round_up(tn // 2, _LANE))
    Kp = _round_up(in_f, tk)
    Np = _round_up(out_f, tn)

    def pad_t(a):  # (out, in) -> (Kp, Np) bf16
        a = jnp.asarray(a, jnp.float32).T
        return jnp.pad(a, ((0, Kp - in_f), (0, Np - out_f))).astype(jnp.bfloat16)

    return dict(
        mu_wt=pad_t(mu_w), rho_wt=pad_t(rho_w),
        mu_b=jnp.pad(jnp.asarray(mu_b, jnp.float32), (0, Np - out_f)),
        rho_b=jnp.pad(jnp.asarray(rho_b, jnp.float32), (0, Np - out_f)),
        in_features=in_f, out_features=out_f, Kp=Kp, Np=Np, tk=tk, tn=tn)


def sample_dropconnect_noise(key, params, p):
    """DropConnect draws for one forward sample, directly in the kernel's (Kp, Np)
    transposed layout (i.i.d., so layout does not change the distribution)."""
    Kp, Np, out_f = params["Kp"], params["Np"], params["out_features"]
    k1, k2, k3, k4 = jax.random.split(key, 4)
    eps_wt = jax.random.normal(k1, (Kp, Np), jnp.float32)
    mask_wt = jax.random.bernoulli(k2, p, (Kp, Np)).astype(jnp.float32)
    eps_b = jax.random.normal(k3, (out_f,), jnp.float32)
    mask_b = jax.random.bernoulli(k4, p, (out_f,)).astype(jnp.float32)
    return mask_wt, eps_wt, mask_b, eps_b


def linear_bayesian_gaussian_forward(x, params, mask_wt, eps_wt, mask_b, eps_b, *,
                                     max_rows_per_call=1024,
                                     vmem_limit_bytes=48 * 1024 * 1024):
    """y = x @ W.T + b with W, b sampled from the DropConnect Gaussian posterior.

    x: (B, in_features); params: output of prepare_linear_bayesian_params;
    mask_wt/eps_wt: (Kp, Np) draws in kernel layout; mask_b/eps_b: (out_features,).
    Returns (B, out_features) float32.
    """
    in_f, out_f = params["in_features"], params["out_features"]
    Kp, Np, tk, tn = params["Kp"], params["Np"], params["tk"], params["tn"]
    B = x.shape[0]
    assert x.shape[1] == in_f and mask_wt.shape == (Kp, Np) and eps_wt.shape == (Kp, Np)

    # bf16 activations / noise into the kernel (f32 accumulation inside).
    x_pad = jnp.pad(jnp.asarray(x, jnp.float32), ((0, 0), (0, Kp - in_f))).astype(jnp.bfloat16)
    mask_wt = jnp.asarray(mask_wt, jnp.bfloat16)
    eps_wt = jnp.asarray(eps_wt, jnp.bfloat16)

    # Pack the four tiny bias vectors into one aligned (8, Np) f32 block (single DMA).
    zeros = jnp.zeros((Np,), jnp.float32)

    def padb(a):
        return jnp.pad(jnp.asarray(a, jnp.float32), (0, Np - out_f))

    bias_pack = jnp.stack([params["mu_b"], params["rho_b"], padb(mask_b), padb(eps_b),
                           zeros, zeros, zeros, zeros], axis=0)

    nj, nk = Np // tn, Kp // tk
    w_spec = pl.BlockSpec((tk, tn), lambda j, k: (k, j))

    def run_chunk(x_chunk):  # x_chunk: (rows, Kp) bf16, rows % 8 == 0
        rows = x_chunk.shape[0]
        return pl.pallas_call(
            _bayes_linear_kernel,
            out_shape=jax.ShapeDtypeStruct((rows, Np), jnp.float32),
            grid_spec=pltpu.PrefetchScalarGridSpec(
                num_scalar_prefetch=0,
                grid=(nj, nk),
                in_specs=[pl.BlockSpec((rows, tk), lambda j, k: (0, k)),
                          w_spec, w_spec, w_spec, w_spec,
                          pl.BlockSpec((8, tn), lambda j, k: (0, j))],
                out_specs=pl.BlockSpec((rows, tn), lambda j, k: (0, j)),
            ),
            compiler_params=pltpu.CompilerParams(
                # j tiles are independent (megacore-parallel); k is the reduction and the
                # o_ref accumulation requires it to stay sequential.
                dimension_semantics=("parallel", "arbitrary"),
                # Fits v7x's 64 MiB physical VMEM; can be raised toward 96 MiB on v5e/v6e.
                vmem_limit_bytes=vmem_limit_bytes),
        )(x_chunk, params["mu_wt"], params["rho_wt"], mask_wt, eps_wt, bias_pack)

    # Batch tiling happens at the wrapper level so each weight-param tile is read from
    # HBM exactly once per chunk (once total whenever B <= max_rows_per_call).
    rows_total = _round_up(B, _SUBLANE)
    chunk = rows_total if rows_total <= max_rows_per_call \
        else _round_up(max_rows_per_call, _SUBLANE)
    rows_total = _round_up(rows_total, chunk)
    x_pad = jnp.pad(x_pad, ((0, rows_total - B), (0, 0)))
    outs = [run_chunk(x_pad[s:s + chunk]) for s in range(0, rows_total, chunk)]
    out = outs[0] if len(outs) == 1 else jnp.concatenate(outs, axis=0)
    return out[:B, :out_f]


# ----------------------------------------------------------------------------- self-test
def _run_case(key, batch, in_features, out_features, *, tk=512, tn=512, p=0.5,
              max_rows=1024):
    ks = jax.random.split(key, 6)
    bound = (1.0 / in_features) ** 0.5
    # muParameter / rhoParameter (init=False) style initialization.
    mu_w = jax.random.uniform(ks[0], (out_features, in_features), jnp.float32, -bound, bound)
    mu_b = jax.random.uniform(ks[1], (out_features,), jnp.float32, -bound, bound)
    rho_w = jax.random.uniform(ks[2], (out_features, in_features), jnp.float32, -5.0, -4.0)
    rho_b = jax.random.uniform(ks[3], (out_features,), jnp.float32, -5.0, -4.0)
    x = jax.random.normal(ks[5], (batch, in_features), jnp.float32)

    prep = prepare_linear_bayesian_params(mu_w, rho_w, mu_b, rho_b, tk=tk, tn=tn)
    mask_wt, eps_wt, mask_b, eps_b = sample_dropconnect_noise(ks[4], prep, p)

    y = linear_bayesian_gaussian_forward(x, prep, mask_wt, eps_wt, mask_b, eps_b,
                                         max_rows_per_call=max_rows)
    jax.block_until_ready(y)
    assert y.shape == (batch, out_features)

    # References (PyTorch layout). The kernel runs bf16 params / bf16 MXU operands with
    # f32 accumulation, so: (1) tight check vs a bf16-matched reference (verifies kernel
    # logic), (2) loose check vs the full-f32 module semantics (documents bf16 accuracy).
    softplus = lambda r: jnp.logaddexp(r, 0.0)
    mask_w = mask_wt[:in_features, :out_features].T
    eps_w = eps_wt[:in_features, :out_features].T

    def ref(mu_wq, rho_wq, mask_wq, eps_wq, dot_dtype):
        w = mu_wq * mask_wq + softplus(rho_wq) * eps_wq               # (out, in)
        b = mu_b * mask_b + softplus(rho_b) * eps_b
        yy = jax.lax.dot_general(x.astype(dot_dtype), w.astype(dot_dtype),
                                 dimension_numbers=(((1,), (1,)), ((), ())),
                                 precision=jax.lax.Precision.HIGHEST,
                                 preferred_element_type=jnp.float32)
        return yy + b[None, :]

    bf = lambda a: a.astype(jnp.bfloat16).astype(jnp.float32)
    y_matched = ref(bf(mu_w), bf(rho_w), bf(mask_w), bf(eps_w), jnp.bfloat16)
    y_f32 = ref(mu_w, rho_w, mask_w, eps_w, jnp.float32)

    err_m = float(jnp.max(jnp.abs(y - y_matched)))
    err_f = float(jnp.max(jnp.abs(y - y_f32)))
    assert jnp.allclose(y, y_matched, atol=2e-3, rtol=2e-3), \
        f"mismatch vs bf16-matched reference (max abs err {err_m})"
    assert jnp.allclose(y, y_f32, atol=5e-2, rtol=5e-2), \
        f"mismatch vs f32 reference (max abs err {err_f})"


if __name__ == "__main__":
    root = jax.random.PRNGKey(0)
    c1, c2, c3 = jax.random.split(root, 3)
    # Aligned case: exercises a (2, 2) grid — k-accumulation directly into the resident
    # output block and the megacore-parallel j axis.
    _run_case(c1, batch=16, in_features=256, out_features=256, tk=128, tn=128)
    # Unaligned case: exercises wrapper padding and output slicing (grid (1, 1)).
    _run_case(c2, batch=10, in_features=200, out_features=96)
    # Large-batch path: wrapper-level row chunking (3 chunks of 16 rows).
    _run_case(c3, batch=36, in_features=128, out_features=128, max_rows=16)
    print("KERNEL_OK")
</pallas_src>

<mosaic_0001>
module attributes {stable_mosaic.version = 11 : i64} {
  func.func @_bayes_linear_kernel(%arg0: i32, %arg1: i32, %arg2: memref<16x128xbf16, #tpu.memory_space<vmem>>, %arg3: memref<128x128xbf16, #tpu.memory_space<vmem>>, %arg4: memref<128x128xbf16, #tpu.memory_space<vmem>>, %arg5: memref<128x128xbf16, #tpu.memory_space<vmem>>, %arg6: memref<128x128xbf16, #tpu.memory_space<vmem>>, %arg7: memref<8x128xf32, #tpu.memory_space<vmem>>, %arg8: memref<16x128xf32, #tpu.memory_space<vmem>>) attributes {dimension_semantics = [#tpu.dimension_semantics<parallel>, #tpu.dimension_semantics<arbitrary>], iteration_bounds = array<i64: 2, 2>, scalar_prefetch = 0 : i64, scratch_operands = 0 : i64, tpu.core_type = #tpu.core_type<tc>, window_params = [{transform_indices = @transform_0, window_bounds = array<i64: 16, 128>}, {transform_indices = @transform_1, window_bounds = array<i64: 128, 128>}, {transform_indices = @transform_2, window_bounds = array<i64: 128, 128>}, {transform_indices = @transform_3, window_bounds = array<i64: 128, 128>}, {transform_indices = @transform_4, window_bounds = array<i64: 128, 128>}, {transform_indices = @transform_5, window_bounds = array<i64: 8, 128>}, {transform_indices = @transform_6, window_bounds = array<i64: 16, 128>}]} {
    %c0 = arith.constant 0 : index
    %c0_0 = arith.constant 0 : index
    %0 = vector.load %arg3[%c0, %c0_0] : memref<128x128xbf16, #tpu.memory_space<vmem>>, vector<128x128xbf16>
    %1 = arith.extf %0 : vector<128x128xbf16> to vector<128x128xf32>
    %c0_1 = arith.constant 0 : index
    %c0_2 = arith.constant 0 : index
    %2 = vector.load %arg5[%c0_1, %c0_2] : memref<128x128xbf16, #tpu.memory_space<vmem>>, vector<128x128xbf16>
    %3 = arith.extf %2 : vector<128x128xbf16> to vector<128x128xf32>
    %c0_3 = arith.constant 0 : index
    %c0_4 = arith.constant 0 : index
    %4 = vector.load %arg6[%c0_3, %c0_4] : memref<128x128xbf16, #tpu.memory_space<vmem>>, vector<128x128xbf16>
    %5 = arith.extf %4 : vector<128x128xbf16> to vector<128x128xf32>
    %c0_5 = arith.constant 0 : index
    %c0_6 = arith.constant 0 : index
    %6 = vector.load %arg4[%c0_5, %c0_6] : memref<128x128xbf16, #tpu.memory_space<vmem>>, vector<128x128xbf16>
    %7 = arith.extf %6 : vector<128x128xbf16> to vector<128x128xf32>
    %cst = arith.constant 0.000000e+00 : f32
    %8 = vector.broadcast %cst : f32 to vector<128x128xf32>
    %9 = arith.maximumf %7, %8 : vector<128x128xf32>
    %10 = vector.broadcast %cst : f32 to vector<128x128xf32>
    %11 = arith.subf %7, %10 : vector<128x128xf32>
    %12 = arith.cmpf one, %11, %11 : vector<128x128xf32>
    %13 = vector.broadcast %cst : f32 to vector<128x128xf32>
    %14 = arith.addf %7, %13 : vector<128x128xf32>
    %15 = math.absf %11 : vector<128x128xf32>
    %cst_7 = arith.constant 0.000000e+00 : f32
    %16 = vector.broadcast %cst_7 : f32 to vector<128x128xf32>
    %17 = arith.subf %16, %15 : vector<128x128xf32>
    %18 = math.exp %17 : vector<128x128xf32>
    %19 = math.log1p %18 : vector<128x128xf32>
    %20 = arith.addf %9, %19 : vector<128x128xf32>
    %21 = arith.select %12, %14, %20 : vector<128x128xi1>, vector<128x128xf32>
    %22 = arith.mulf %1, %3 : vector<128x128xf32>
    %23 = arith.mulf %21, %5 : vector<128x128xf32>
    %24 = arith.addf %22, %23 : vector<128x128xf32>
    %25 = arith.truncf %24 : vector<128x128xf32> to vector<128x128xbf16>
    %c0_8 = arith.constant 0 : index
    %c0_9 = arith.constant 0 : index
    %26 = vector.load %arg2[%c0_8, %c0_9] : memref<16x128xbf16, #tpu.memory_space<vmem>>, vector<16x128xbf16>
    %cst_10 = arith.constant dense<0.000000e+00> : vector<16x128xf32>
    %27 = tpu.matmul %26, %25, %cst_10 {dimension_numbers = #tpu.dot_dimension_numbers<[1], [0], [0], [1], [0, 0, 1, 1], [], []>} : vector<16x128xbf16>, vector<128x128xbf16>, vector<16x128xf32> -> vector<16x128xf32>
    %c0_i32 = arith.constant 0 : i32
    %28 = arith.cmpi eq, %arg1, %c0_i32 : i32
    %29 = arith.extui %28 : i1 to i32
    %c0_i32_11 = arith.constant 0 : i32
    %30 = arith.cmpi ne, %29, %c0_i32_11 : i32
    scf.if %30 {
      %c0_15 = arith.constant 0 : index
      %c0_16 = arith.constant 0 : index
      %37 = vector.load %arg8[%c0_15, %c0_16] : memref<16x128xf32, #tpu.memory_space<vmem>>, vector<16x128xf32>
      tpu.vector_store %arg8[%c0_15, %c0_16], %27 {strides = array<i32>} : memref<16x128xf32, #tpu.memory_space<vmem>>, vector<16x128xf32>,
    } else {
    }
    %c0_i32_12 = arith.constant 0 : i32
    %31 = arith.cmpi sgt, %arg1, %c0_i32_12 : i32
    %32 = arith.extui %31 : i1 to i32
    %c0_i32_13 = arith.constant 0 : i32
    %33 = arith.cmpi ne, %32, %c0_i32_13 : i32
    scf.if %33 {
      %c0_15 = arith.constant 0 : index
      %c0_16 = arith.constant 0 : index
      %37 = vector.load %arg8[%c0_15, %c0_16] : memref<16x128xf32, #tpu.memory_space<vmem>>, vector<16x128xf32>
      %38 = arith.addf %37, %27 : vector<16x128xf32>
      %c0_17 = arith.constant 0 : index
      %c0_18 = arith.constant 0 : index
      %39 = vector.load %arg8[%c0_17, %c0_18] : memref<16x128xf32, #tpu.memory_space<vmem>>, vector<16x128xf32>
      tpu.vector_store %arg8[%c0_17, %c0_18], %38 {strides = array<i32>} : memref<16x128xf32, #tpu.memory_space<vmem>>, vector<16x128xf32>,
    } else {
    }
    %c1_i32 = arith.constant 1 : i32
    %34 = arith.cmpi eq, %arg1, %c1_i32 : i32
    %35 = arith.extui %34 : i1 to i32
    %c0_i32_14 = arith.constant 0 : i32
    %36 = arith.cmpi ne, %35, %c0_i32_14 : i32
    scf.if %36 {
      %c0_15 = arith.constant 0 : index
      %c0_16 = arith.constant 0 : index
      %37 = vector.load %arg7[%c0_15, %c0_16] : memref<8x128xf32, #tpu.memory_space<vmem>>, vector<1x128xf32>
      %c2 = arith.constant 2 : index
      %c0_17 = arith.constant 0 : index
      %38 = vector.load %arg7[%c2, %c0_17] : memref<8x128xf32, #tpu.memory_space<vmem>>, vector<1x128xf32>
      %39 = arith.mulf %37, %38 : vector<1x128xf32>
      %c1 = arith.constant 1 : index
      %c0_18 = arith.constant 0 : index
      %40 = vector.load %arg7[%c1, %c0_18] : memref<8x128xf32, #tpu.memory_space<vmem>>, vector<1x128xf32>
      %cst_19 = arith.constant 0.000000e+00 : f32
      %41 = vector.broadcast %cst_19 : f32 to vector<1x128xf32>
      %42 = arith.maximumf %40, %41 : vector<1x128xf32>
      %43 = vector.broadcast %cst_19 : f32 to vector<1x128xf32>
      %44 = arith.subf %40, %43 : vector<1x128xf32>
      %45 = arith.cmpf one, %44, %44 : vector<1x128xf32>
      %46 = vector.broadcast %cst_19 : f32 to vector<1x128xf32>
      %47 = arith.addf %40, %46 : vector<1x128xf32>
      %48 = math.absf %44 : vector<1x128xf32>
      %cst_20 = arith.constant 0.000000e+00 : f32
      %49 = vector.broadcast %cst_20 : f32 to vector<1x128xf32>
      %50 = arith.subf %49, %48 : vector<1x128xf32>
      %51 = math.exp %50 : vector<1x128xf32>
      %52 = math.log1p %51 : vector<1x128xf32>
      %53 = arith.addf %42, %52 : vector<1x128xf32>
      %54 = arith.select %45, %47, %53 : vector<1x128xi1>, vector<1x128xf32>
      %c3 = arith.constant 3 : index
      %c0_21 = arith.constant 0 : index
      %55 = vector.load %arg7[%c3, %c0_21] : memref<8x128xf32, #tpu.memory_space<vmem>>, vector<1x128xf32>
      %56 = arith.mulf %54, %55 : vector<1x128xf32>
      %57 = arith.addf %39, %56 : vector<1x128xf32>
      %c0_22 = arith.constant 0 : index
      %c0_23 = arith.constant 0 : index
      %58 = vector.load %arg8[%c0_22, %c0_23] : memref<16x128xf32, #tpu.memory_space<vmem>>, vector<16x128xf32>
      %59 = vector.broadcast %57 : vector<1x128xf32> to vector<16x128xf32>
      %60 = arith.addf %58, %59 : vector<16x128xf32>
      %c0_24 = arith.constant 0 : index
      %c0_25 = arith.constant 0 : index
      %61 = vector.load %arg8[%c0_24, %c0_25] : memref<16x128xf32, #tpu.memory_space<vmem>>, vector<16x128xf32>
      tpu.vector_store %arg8[%c0_24, %c0_25], %60 {strides = array<i32>} : memref<16x128xf32, #tpu.memory_space<vmem>>, vector<16x128xf32>,
    } else {
    }
    return
  }
  func.func @transform_0(%arg0: i32, %arg1: i32) -> (i32, i32) {
    %c0_i32 = arith.constant 0 : i32
    %c0_i32_0 = arith.constant 0 : i32
    return %c0_i32, %arg1 : i32, i32
  }
  func.func @transform_1(%arg0: i32, %arg1: i32) -> (i32, i32) {
    %c0_i32 = arith.constant 0 : i32
    return %arg1, %arg0 : i32, i32
  }
  func.func @transform_2(%arg0: i32, %arg1: i32) -> (i32, i32) {
    %c0_i32 = arith.constant 0 : i32
    return %arg1, %arg0 : i32, i32
  }
  func.func @transform_3(%arg0: i32, %arg1: i32) -> (i32, i32) {
    %c0_i32 = arith.constant 0 : i32
    return %arg1, %arg0 : i32, i32
  }
  func.func @transform_4(%arg0: i32, %arg1: i32) -> (i32, i32) {
    %c0_i32 = arith.constant 0 : i32
    return %arg1, %arg0 : i32, i32
  }
  func.func @transform_5(%arg0: i32, %arg1: i32) -> (i32, i32) {
    %c0_i32 = arith.constant 0 : i32
    %c0_i32_0 = arith.constant 0 : i32
    return %c0_i32, %arg0 : i32, i32
  }
  func.func @transform_6(%arg0: i32, %arg1: i32) -> (i32, i32) {
    %c0_i32 = arith.constant 0 : i32
    %c0_i32_0 = arith.constant 0 : i32
    return %c0_i32, %arg0 : i32, i32
  }
}

</mosaic_0001>

<llo_original>
// kernel: tpu_custom_call.1
$region0: #{tpu_custom_call.1}
  #allocation0 [shape = 'u32[]', space=smem, size = 0x4, offset = 0x4, fixed_abs, tag = 'smem constant byte address 0x4 - core index']
  #allocation1 [shape = 'u32[144,128]{1,0:T(1,128)}', space=vmem, size = 0x12000, scoped, tag = 'internal scratch']
  %s0 = inlined_call_operand.hbm [shape: bf16[16,256], index: 0, kind: input, shape index: {}]
  %s1 = inlined_call_operand.hbm [shape: bf16[256,256], index: 1, kind: input, shape index: {}]
  %s2 = inlined_call_operand.hbm [shape: bf16[256,256], index: 2, kind: input, shape index: {}]
  %s3 = inlined_call_operand.hbm [shape: bf16[256,256], index: 3, kind: input, shape index: {}]
  %s4 = inlined_call_operand.hbm [shape: bf16[256,256], index: 4, kind: input, shape index: {}]
  %s5 = inlined_call_operand.vmem [shape: f32[8,256], index: 5, kind: input, shape index: {}]
  %s6 = inlined_call_operand.hbm [shape: f32[16,256], index: 6, kind: output, shape index: {}]
  %s7 = sld [smem:[#allocation0]]
  $region89: #{tpu_custom_call.1} parent=0
    _
  %s9 = ssub.s32 1, %s7
  %s10 = scalar_select 0, %s9, %s7
  $region1: #{tpu_custom_call.1} parent=0
    #allocation2 [shape = 'u8[8192]{0}', space=vmem, size = 0x2000, scoped, tag = 'input window, operand 0']
    #allocation3 [shape = 's32[2]{0}', space=sflag, size = 0x8, scoped, tag = 'scoped memory for tpu_custom_call.1']
    #allocation4 [shape = 's32[2]{0}', space=sflag, size = 0x8, scoped, tag = 'scoped memory for tpu_custom_call.1']
    #allocation5 [shape = 'u8[65536]{0}', space=vmem, size = 0x10000, scoped, tag = 'input window, operand 1']
    #allocation6 [shape = 's32[2]{0}', space=sflag, size = 0x8, scoped, tag = 'scoped memory for tpu_custom_call.1']
    #allocation7 [shape = 'u8[65536]{0}', space=vmem, size = 0x10000, scoped, tag = 'input window, operand 2']
    #allocation8 [shape = 'u8[65536]{0}', space=vmem, size = 0x10000, scoped, tag = 'input window, operand 3']
    #allocation9 [shape = 's32[2]{0}', space=sflag, size = 0x8, scoped, tag = 'scoped memory for tpu_custom_call.1']
    #allocation10 [shape = 'u8[65536]{0}', space=vmem, size = 0x10000, scoped, tag = 'input window, operand 4']
    #allocation11 [shape = 'u8[16384]{0}', space=vmem, size = 0x4000, scoped, tag = 'output window, operand 0']
    %11 = vsyncpa [#allocation3], 0
    %s12 = scalar_lea.sflag [#allocation3], 1
    %13 = vsyncpa %s12, 0
    %14 = vsyncpa [#allocation6], 0
    %s15 = scalar_lea.sflag [#allocation6], 1
    %16 = vsyncpa %s15, 0
    %17 = vsyncpa [#allocation9], 0
    %s18 = scalar_lea.sflag [#allocation9], 1
    %19 = vsyncpa %s18, 0
    %20 = vsyncpa [#allocation4], 0
    %s21 = scalar_lea.sflag [#allocation4], 1
    %22 = vsyncpa %s21, 0
    loop: start=0, step=1, limit=6
    $region2: #{tpu_custom_call.1} parent=1 // loop_pre_header
      _
    $region3: #{tpu_custom_call.1} parent=1 // loop_header
      %s24 = sphi 0, %s28
      %p25 = scmp.ge.s32.totalorder %s24, 6
      %s31 = sphi 0, %s43
      %s32 = sphi 0, %s39
      %s33 = sphi 0, %s31
      %s34 = sphi 0, %s32
      %s35 = sphi 0, %s33
      %s36 = sphi 0, %s34
      %s46 = sphi 0, %s48
      %s49 = sphi 0, %s46
      %s50 = sphi 0, %s49
      %s66 = sphi 0, %s50
      %s74 = sphi 0, %s76
      %s77 = sphi 0, %s74
      %s78 = sphi 0, %s77
      %s94 = sphi 0, %s78
      %s102 = sphi 0, %s104
      %s105 = sphi 0, %s102
      %s106 = sphi 0, %s105
      %s122 = sphi 0, %s106
      %s130 = sphi 0, %s132
      %s133 = sphi 0, %s130
      %s134 = sphi 0, %s133
      %s150 = sphi 0, %s134
      %s158 = sphi 0, %s160
      %s161 = sphi 0, %s158
      %s162 = sphi 0, %s161
      %s178 = sphi 0, %s162
      %s184 = sphi 0, %s186
      %s187 = sphi 0, %s184
      %s188 = sphi 0, %s187
      %s204 = sphi 0, %s188
      %s210 = sphi 0, %s212
      %s213 = sphi 0, %s210
      %s214 = sphi 0, %s213
      %s230 = sphi 0, %s214
    $region4: #{tpu_custom_call.1} parent=1 // loop_header_branch
      %27 = sbr.rel (%p25) target = $region8
    $region5: #{tpu_custom_call.1} parent=1 // loop_body
      %s29 = ssub.s32 %s24, 1
      %s30 = ssub.s32 %s24, 2
      %s37 = sadd.s32 1, %s32
      %p38 = scmp.ge.s32.totalorder %s37, 2
      %s39 = scalar_select %p38, 0, %s37
      %s40 = sadd.s32 1, %s31
      %s41 = scalar_select %p38, %s40, %s31
      %p42 = scmp.ge.s32.totalorder %s41, 2
      %s43 = scalar_select %p42, 0, %s41
      %s44 = ssub.s32 %s32, %s39
      %p45 = scmp.eq.s32.totalorder %s44, 0
      %s47 = sadd.s32 %s46, 1
      %s48 = scalar_select %p45, %s46, %s47
      %p51 = pneg %p45
      %p52 = scmp.eq.s32.totalorder %s24, 3
      %p53 = por %p51, %p52
      %p54 = scmp.ne.s32.totalorder %s46, %s49
      %p55 = scmp.eq.s32.totalorder %s24, 0
      %p56 = por %p54, %p55
      %p57 = scmp.ne.s32.totalorder %s46, %s49
      %p58 = scmp.eq.s32.totalorder %s29, 3
      %p59 = por %p57, %p58
      %p60 = scmp.ne.s32.totalorder %s49, %s50
      %p61 = scmp.eq.s32.totalorder %s29, 0
      %p62 = por %p60, %p61
      %p63 = scmp.ne.s32.totalorder %s49, %s50
      %p64 = scmp.eq.s32.totalorder %s30, 3
      %p65 = por %p63, %p64
      %p67 = scmp.ne.s32.totalorder %s50, %s66
      %p68 = scmp.eq.s32.totalorder %s30, 0
      %p69 = por %p67, %p68
      %s70 = ssub.s32 %s32, %s39
      %s71 = ssub.s32 %s31, %s43
      %s72 = sor.u32 %s70, %s71
      %p73 = scmp.eq.s32.totalorder %s72, 0
      %s75 = sadd.s32 %s74, 1
      %s76 = scalar_select %p73, %s74, %s75
      %p79 = pneg %p73
      %p80 = scmp.eq.s32.totalorder %s24, 3
      %p81 = por %p79, %p80
      %p82 = scmp.ne.s32.totalorder %s74, %s77
      %p83 = scmp.eq.s32.totalorder %s24, 0
      %p84 = por %p82, %p83
      %p85 = scmp.ne.s32.totalorder %s74, %s77
      %p86 = scmp.eq.s32.totalorder %s29, 3
      %p87 = por %p85, %p86
      %p88 = scmp.ne.s32.totalorder %s77, %s78
      %p89 = scmp.eq.s32.totalorder %s29, 0
      %p90 = por %p88, %p89
      %p91 = scmp.ne.s32.totalorder %s77, %s78
      %p92 = scmp.eq.s32.totalorder %s30, 3
      %p93 = por %p91, %p92
      %p95 = scmp.ne.s32.totalorder %s78, %s94
      %p96 = scmp.eq.s32.totalorder %s30, 0
      %p97 = por %p95, %p96
      %s98 = ssub.s32 %s32, %s39
      %s99 = ssub.s32 %s31, %s43
      %s100 = sor.u32 %s98, %s99
      %p101 = scmp.eq.s32.totalorder %s100, 0
      %s103 = sadd.s32 %s102, 1
      %s104 = scalar_select %p101, %s102, %s103
      %p107 = pneg %p101
      %p108 = scmp.eq.s32.totalorder %s24, 3
      %p109 = por %p107, %p108
      %p110 = scmp.ne.s32.totalorder %s102, %s105
      %p111 = scmp.eq.s32.totalorder %s24, 0
      %p112 = por %p110, %p111
      %p113 = scmp.ne.s32.totalorder %s102, %s105
      %p114 = scmp.eq.s32.totalorder %s29, 3
      %p115 = por %p113, %p114
      %p116 = scmp.ne.s32.totalorder %s105, %s106
      %p117 = scmp.eq.s32.totalorder %s29, 0
      %p118 = por %p116, %p117
      %p119 = scmp.ne.s32.totalorder %s105, %s106
      %p120 = scmp.eq.s32.totalorder %s30, 3
      %p121 = por %p119, %p120
      %p123 = scmp.ne.s32.totalorder %s106, %s122
      %p124 = scmp.eq.s32.totalorder %s30, 0
      %p125 = por %p123, %p124
      %s126 = ssub.s32 %s32, %s39
      %s127 = ssub.s32 %s31, %s43
      %s128 = sor.u32 %s126, %s127
      %p129 = scmp.eq.s32.totalorder %s128, 0
      %s131 = sadd.s32 %s130, 1
      %s132 = scalar_select %p129, %s130, %s131
      %p135 = pneg %p129
      %p136 = scmp.eq.s32.totalorder %s24, 3
      %p137 = por %p135, %p136
      %p138 = scmp.ne.s32.totalorder %s130, %s133
      %p139 = scmp.eq.s32.totalorder %s24, 0
      %p140 = por %p138, %p139
      %p141 = scmp.ne.s32.totalorder %s130, %s133
      %p142 = scmp.eq.s32.totalorder %s29, 3
      %p143 = por %p141, %p142
      %p144 = scmp.ne.s32.totalorder %s133, %s134
      %p145 = scmp.eq.s32.totalorder %s29, 0
      %p146 = por %p144, %p145
      %p147 = scmp.ne.s32.totalorder %s133, %s134
      %p148 = scmp.eq.s32.totalorder %s30, 3
      %p149 = por %p147, %p148
      %p151 = scmp.ne.s32.totalorder %s134, %s150
      %p152 = scmp.eq.s32.totalorder %s30, 0
      %p153 = por %p151, %p152
      %s154 = ssub.s32 %s32, %s39
      %s155 = ssub.s32 %s31, %s43
      %s156 = sor.u32 %s154, %s155
      %p157 = scmp.eq.s32.totalorder %s156, 0
      %s159 = sadd.s32 %s158, 1
      %s160 = scalar_select %p157, %s158, %s159
      %p163 = pneg %p157
      %p164 = scmp.eq.s32.totalorder %s24, 3
      %p165 = por %p163, %p164
      %p166 = scmp.ne.s32.totalorder %s158, %s161
      %p167 = scmp.eq.s32.totalorder %s24, 0
      %p168 = por %p166, %p167
      %p169 = scmp.ne.s32.totalorder %s158, %s161
      %p170 = scmp.eq.s32.totalorder %s29, 3
      %p171 = por %p169, %p170
      %p172 = scmp.ne.s32.totalorder %s161, %s162
      %p173 = scmp.eq.s32.totalorder %s29, 0
      %p174 = por %p172, %p173
      %p175 = scmp.ne.s32.totalorder %s161, %s162
      %p176 = scmp.eq.s32.totalorder %s30, 3
      %p177 = por %p175, %p176
      %p179 = scmp.ne.s32.totalorder %s162, %s178
      %p180 = scmp.eq.s32.totalorder %s30, 0
      %p181 = por %p179, %p180
      %s182 = ssub.s32 %s31, %s43
      %p183 = scmp.eq.s32.totalorder %s182, 0
      %s185 = sadd.s32 %s184, 1
      %s186 = scalar_select %p183, %s184, %s185
      %p189 = pneg %p183
      %p190 = scmp.eq.s32.totalorder %s24, 3
      %p191 = por %p189, %p190
      %p192 = scmp.ne.s32.totalorder %s184, %s187
      %p193 = scmp.eq.s32.totalorder %s24, 0
      %p194 = por %p192, %p193
      %p195 = scmp.ne.s32.totalorder %s184, %s187
      %p196 = scmp.eq.s32.totalorder %s29, 3
      %p197 = por %p195, %p196
      %p198 = scmp.ne.s32.totalorder %s187, %s188
      %p199 = scmp.eq.s32.totalorder %s29, 0
      %p200 = por %p198, %p199
      %p201 = scmp.ne.s32.totalorder %s187, %s188
      %p202 = scmp.eq.s32.totalorder %s30, 3
      %p203 = por %p201, %p202
      %p205 = scmp.ne.s32.totalorder %s188, %s204
      %p206 = scmp.eq.s32.totalorder %s30, 0
      %p207 = por %p205, %p206
      %s208 = ssub.s32 %s31, %s43
      %p209 = scmp.eq.s32.totalorder %s208, 0
      %s211 = sadd.s32 %s210, 1
      %s212 = scalar_select %p209, %s210, %s211
      %p215 = pneg %p209
      %p216 = scmp.eq.s32.totalorder %s24, 3
      %p217 = por %p215, %p216
      %p218 = scmp.ne.s32.totalorder %s210, %s213
      %p219 = scmp.eq.s32.totalorder %s24, 0
      %p220 = por %p218, %p219
      %p221 = scmp.ne.s32.totalorder %s210, %s213
      %p222 = scmp.eq.s32.totalorder %s29, 3
      %p223 = por %p221, %p222
      %p224 = scmp.ne.s32.totalorder %s213, %s214
      %p225 = scmp.eq.s32.totalorder %s29, 0
      %p226 = por %p224, %p225
      %p227 = scmp.ne.s32.totalorder %s213, %s214
      %p228 = scmp.eq.s32.totalorder %s30, 3
      %p229 = por %p227, %p228
      %p231 = scmp.ne.s32.totalorder %s214, %s230
      %p232 = scmp.eq.s32.totalorder %s30, 0
      %p233 = por %p231, %p232
      %p234 = scmp.le.s32.totalorder 1, %s24
      %p235 = scmp.lt.s32.totalorder %s24, 5
      %p236 = pnand %p234, %p235
      %p237 = pneg %p236
      // Predicated region
      $region9: #{tpu_custom_call.1} parent=5 // pred_check
        _
      $region10: #{tpu_custom_call.1} parent=5 // pred_check_branch
        %239 = sbr.rel (%p236) target = $region12
      $region11: #{tpu_custom_call.1} parent=5 // pred_region
        %s240 = ssub.s32 %s24, 1
      $region12: #{tpu_custom_call.1} parent=5 // pred_fallthru
        _
      %p241 = scmp.lt.s32.totalorder %s24, 4
      // Predicated region
      $region13: #{tpu_custom_call.1} parent=5 // pred_check
        %p242 = pneg %p241
      $region14: #{tpu_custom_call.1} parent=5 // pred_check_branch
        %244 = sbr.rel (%p242) target = $region16
      $region15: #{tpu_custom_call.1} parent=5 // pred_region
        // Predicated region
        $region17: #{tpu_custom_call.1} parent=15 // pred_check
          %p245 = pneg %p56
        $region18: #{tpu_custom_call.1} parent=15 // pred_check_branch
          %247 = sbr.rel (%p245) target = $region20
        $region19: #{tpu_custom_call.1} parent=15 // pred_region
          %s248 = sand.u32 %s46, 1
          %s249 = scalar_lea.sflag [#allocation3], %s248
          %s250 = sand.u32 %s46, 1
          %s251 = smul.addr %s250, 8
          %s252 = scalar_lea.vmem [#allocation2], %s251
          %s254 = ssub.s32 128, 128
          %255 = vsyncadd %s249, %s254
          %s256 = smul.addr %s32, 64
          %s257 = scalar_lea.hbm %s0, %s256
          %s258 = sshll.u32 %s252, 4
          %s259 = int_to_ptr.vmem [resolvable:$true] %s258
          %264 = dma.hbm_to_vmem [thread:$0]  %s257, 128, %s259, %s249, 128, 64, 4
        $region20: #{tpu_custom_call.1} parent=15 // pred_fallthru
          _
        // Predicated region
        $region21: #{tpu_custom_call.1} parent=15 // pred_check
          %p265 = pneg %p84
        $region22: #{tpu_custom_call.1} parent=15 // pred_check_branch
          %267 = sbr.rel (%p265) target = $region24
        $region23: #{tpu_custom_call.1} parent=15 // pred_region
          %s268 = sand.u32 %s24, 1
          %s269 = scalar_lea.sflag [#allocation6], %s268
          %s270 = sand.u32 %s74, 1
          %s271 = smul.addr %s270, 64
          %s272 = scalar_lea.vmem [#allocation5], %s271
          %s273 = smul.u32 16, %s32
          %s275 = ssub.s32 1024, 1024
          %276 = vsyncadd %s269, %s275
          %s277 = smul.addr %s273, 2
          %s278 = sadd.s32 %s31, %s277
          %s279 = smul.addr %s278, 64
          %s280 = scalar_lea.hbm %s1, %s279
          %s281 = sshll.u32 %s272, 4
          %s282 = int_to_ptr.vmem [resolvable:$true] %s281
          %287 = dma.hbm_to_vmem [thread:$0]  %s280, 1024, %s282, %s269, 128, 64, 4
        $region24: #{tpu_custom_call.1} parent=15 // pred_fallthru
          _
        // Predicated region
        $region25: #{tpu_custom_call.1} parent=15 // pred_check
          %p288 = pneg %p112
        $region26: #{tpu_custom_call.1} parent=15 // pred_check_branch
          %290 = sbr.rel (%p288) target = $region28
        $region27: #{tpu_custom_call.1} parent=15 // pred_region
          %s291 = sand.u32 %s24, 1
          %s292 = scalar_lea.sflag [#allocation6], %s291
          %s293 = sand.u32 %s102, 1
          %s294 = smul.addr %s293, 64
          %s295 = scalar_lea.vmem [#allocation7], %s294
          %s296 = smul.u32 16, %s32
          %s298 = ssub.s32 1024, 1024
          %299 = vsyncadd %s292, %s298
          %s300 = smul.addr %s296, 2
          %s301 = sadd.s32 %s31, %s300
          %s302 = smul.addr %s301, 64
          %s303 = scalar_lea.hbm %s2, %s302
          %s304 = sshll.u32 %s295, 4
          %s305 = int_to_ptr.vmem [resolvable:$true] %s304
          %310 = dma.hbm_to_vmem [thread:$0]  %s303, 1024, %s305, %s292, 128, 64, 4
        $region28: #{tpu_custom_call.1} parent=15 // pred_fallthru
          _
        // Predicated region
        $region29: #{tpu_custom_call.1} parent=15 // pred_check
          %p311 = pneg %p140
        $region30: #{tpu_custom_call.1} parent=15 // pred_check_branch
          %313 = sbr.rel (%p311) target = $region32
        $region31: #{tpu_custom_call.1} parent=15 // pred_region
          %s314 = sand.u32 %s24, 1
          %s315 = scalar_lea.sflag [#allocation9], %s314
          %s316 = sand.u32 %s130, 1
          %s317 = smul.addr %s316, 64
          %s318 = scalar_lea.vmem [#allocation8], %s317
          %s319 = smul.u32 16, %s32
          %s321 = ssub.s32 1024, 1024
          %322 = vsyncadd %s315, %s321
          %s323 = smul.addr %s319, 2
          %s324 = sadd.s32 %s31, %s323
          %s325 = smul.addr %s324, 64
          %s326 = scalar_lea.hbm %s3, %s325
          %s327 = sshll.u32 %s318, 4
          %s328 = int_to_ptr.vmem [resolvable:$true] %s327
          %333 = dma.hbm_to_vmem [thread:$0]  %s326, 1024, %s328, %s315, 128, 64, 4
        $region32: #{tpu_custom_call.1} parent=15 // pred_fallthru
          _
        // Predicated region
        $region33: #{tpu_custom_call.1} parent=15 // pred_check
          %p334 = pneg %p168
        $region34: #{tpu_custom_call.1} parent=15 // pred_check_branch
          %336 = sbr.rel (%p334) target = $region36
        $region35: #{tpu_custom_call.1} parent=15 // pred_region
          %s337 = sand.u32 %s24, 1
          %s338 = scalar_lea.sflag [#allocation9], %s337
          %s339 = sand.u32 %s158, 1
          %s340 = smul.addr %s339, 64
          %s341 = scalar_lea.vmem [#allocation10], %s340
          %s342 = smul.u32 16, %s32
          %s344 = ssub.s32 1024, 1024
          %345 = vsyncadd %s338, %s344
          %s346 = smul.addr %s342, 2
          %s347 = sadd.s32 %s31, %s346
          %s348 = smul.addr %s347, 64
          %s349 = scalar_lea.hbm %s4, %s348
          %s350 = sshll.u32 %s341, 4
          %s351 = int_to_ptr.vmem [resolvable:$true] %s350
          %356 = dma.hbm_to_vmem [thread:$0]  %s349, 1024, %s351, %s338, 128, 64, 4
        $region36: #{tpu_custom_call.1} parent=15 // pred_fallthru
          _
        // Predicated region
        $region37: #{tpu_custom_call.1} parent=15 // pred_check
          %p357 = pneg %p194
        $region38: #{tpu_custom_call.1} parent=15 // pred_check_branch
          %359 = sbr.rel (%p357) target = $region40
        $region39: #{tpu_custom_call.1} parent=15 // pred_region
          %p360 = scmp.lt.s32.totalorder %s31, 1
          %s361 = scalar_select %p360, %s31, 1
          %s362 = smul.addr %s361, 8
          %s363 = scalar_lea.vmem %s5, %s362
        $region40: #{tpu_custom_call.1} parent=15 // pred_fallthru
          _
      $region16: #{tpu_custom_call.1} parent=5 // pred_fallthru
        _
      %p364 = scmp.le.s32.totalorder 1, %s24
      %p365 = scmp.lt.s32.totalorder %s24, 5
      %p366 = pnand %p364, %p365
      %p367 = pneg %p366
      // Predicated region
      $region41: #{tpu_custom_call.1} parent=5 // pred_check
        _
      $region42: #{tpu_custom_call.1} parent=5 // pred_check_branch
        %369 = sbr.rel (%p366) target = $region44
      $region43: #{tpu_custom_call.1} parent=5 // pred_region
        %s370 = ssub.s32 %s24, 1
        %s371 = sand.u32 %s49, 1
        %s372 = scalar_lea.sflag [#allocation3], %s371
        %s373 = sand.u32 %s49, 1
        %s374 = smul.addr %s373, 8
        %s375 = scalar_lea.vmem [#allocation2], %s374
        // Predicated region
        $region45: #{tpu_custom_call.1} parent=43 // pred_check
          %p376 = pneg %p62
        $region46: #{tpu_custom_call.1} parent=43 // pred_check_branch
          %378 = sbr.rel (%p376) target = $region48
        $region47: #{tpu_custom_call.1} parent=43 // pred_region
          %379 = dma.done %s372, 128
        $region48: #{tpu_custom_call.1} parent=43 // pred_fallthru
          _
        %s380 = sand.u32 %s29, 1
        %s381 = scalar_lea.sflag [#allocation6], %s380
        %s382 = sand.u32 %s77, 1
        %s383 = smul.addr %s382, 64
        %s384 = scalar_lea.vmem [#allocation5], %s383
        // Predicated region
        $region49: #{tpu_custom_call.1} parent=43 // pred_check
          %p385 = pneg %p90
        $region50: #{tpu_custom_call.1} parent=43 // pred_check_branch
          %387 = sbr.rel (%p385) target = $region52
        $region51: #{tpu_custom_call.1} parent=43 // pred_region
          %388 = dma.done %s381, 1024
        $region52: #{tpu_custom_call.1} parent=43 // pred_fallthru
          _
        %s389 = sand.u32 %s29, 1
        %s390 = scalar_lea.sflag [#allocation6], %s389
        %s391 = sand.u32 %s105, 1
        %s392 = smul.addr %s391, 64
        %s393 = scalar_lea.vmem [#allocation7], %s392
        // Predicated region
        $region53: #{tpu_custom_call.1} parent=43 // pred_check
          %p394 = pneg %p118
        $region54: #{tpu_custom_call.1} parent=43 // pred_check_branch
          %396 = sbr.rel (%p394) target = $region56
        $region55: #{tpu_custom_call.1} parent=43 // pred_region
          %397 = dma.done %s390, 1024
        $region56: #{tpu_custom_call.1} parent=43 // pred_fallthru
          _
        %s398 = sand.u32 %s29, 1
        %s399 = scalar_lea.sflag [#allocation9], %s398
        %s400 = sand.u32 %s133, 1
        %s401 = smul.addr %s400, 64
        %s402 = scalar_lea.vmem [#allocation8], %s401
        // Predicated region
        $region57: #{tpu_custom_call.1} parent=43 // pred_check
          %p403 = pneg %p146
        $region58: #{tpu_custom_call.1} parent=43 // pred_check_branch
          %405 = sbr.rel (%p403) target = $region60
        $region59: #{tpu_custom_call.1} parent=43 // pred_region
          %406 = dma.done %s399, 1024
        $region60: #{tpu_custom_call.1} parent=43 // pred_fallthru
          _
        %s407 = sand.u32 %s29, 1
        %s408 = scalar_lea.sflag [#allocation9], %s407
        %s409 = sand.u32 %s161, 1
        %s410 = smul.addr %s409, 64
        %s411 = scalar_lea.vmem [#allocation10], %s410
        // Predicated region
        $region61: #{tpu_custom_call.1} parent=43 // pred_check
          %p412 = pneg %p174
        $region62: #{tpu_custom_call.1} parent=43 // pred_check_branch
          %414 = sbr.rel (%p412) target = $region64
        $region63: #{tpu_custom_call.1} parent=43 // pred_region
          %415 = dma.done %s408, 1024
        $region64: #{tpu_custom_call.1} parent=43 // pred_fallthru
          _
        %s416 = sand.u32 %s49, 1
        %s417 = scalar_lea.sflag [#allocation3], %s416
        %s418 = sand.u32 %s49, 1
        %s419 = smul.addr %s418, 8
        %s420 = scalar_lea.vmem [#allocation2], %s419
        %p421 = pneg %p62
        %p422 = pneg %p59
        %s423 = sand.u32 %s29, 1
        %s424 = scalar_lea.sflag [#allocation6], %s423
        %s425 = sand.u32 %s77, 1
        %s426 = smul.addr %s425, 64
        %s427 = scalar_lea.vmem [#allocation5], %s426
        %p428 = pneg %p90
        %p429 = pneg %p87
        %s430 = sand.u32 %s29, 1
        %s431 = scalar_lea.sflag [#allocation6], %s430
        %s432 = sand.u32 %s105, 1
        %s433 = smul.addr %s432, 64
        %s434 = scalar_lea.vmem [#allocation7], %s433
        %p435 = pneg %p118
        %p436 = pneg %p115
        %s437 = sand.u32 %s29, 1
        %s438 = scalar_lea.sflag [#allocation9], %s437
        %s439 = sand.u32 %s133, 1
        %s440 = smul.addr %s439, 64
        %s441 = scalar_lea.vmem [#allocation8], %s440
        %p442 = pneg %p146
        %p443 = pneg %p143
        %s444 = sand.u32 %s29, 1
        %s445 = scalar_lea.sflag [#allocation9], %s444
        %s446 = sand.u32 %s161, 1
        %s447 = smul.addr %s446, 64
        %s448 = scalar_lea.vmem [#allocation10], %s447
        %p449 = pneg %p174
        %p450 = pneg %p171
        %p451 = scmp.lt.s32.totalorder %s33, 1
        %s452 = scalar_select %p451, %s33, 1
        %s453 = smul.addr %s452, 8
        %s454 = scalar_lea.vmem %s5, %s453
        %p455 = pneg %p200
        %p456 = pneg %p197
        %p457 = pneg %p226
        %p458 = pneg %p223
        %s459 = sand.u32 %s213, 1
        %s460 = scalar_lea.sflag [#allocation4], %s459
        %s461 = sand.u32 %s213, 1
        %s462 = smul.addr %s461, 16
        %s463 = scalar_lea.vmem [#allocation11], %s462
        %s464 = smul.u32 16, %s34
        %s465 = smul.u32 16, %s34
        %s466 = smul.u32 16, %s34
        %s467 = smul.u32 16, %s34
        %p468 = scmp.lt.s32.totalorder %s33, 1
        %s469 = scalar_select %p468, %s33, 1
        %s470 = smul.addr %s469, 8
        %s471 = scalar_lea.vmem %s5, %s470
        %v473 = vld [vmem:[%s384] sm:$0xf]
        %v474 = vld [vmem:[%s384 + $0x4] sm:$0xf]
        %v475 = vld [vmem:[%s384 + $0x8] sm:$0xf]
        %v476 = vld [vmem:[%s384 + $0xc] sm:$0xf]
        %v477 = vld [vmem:[%s384 + $0x10] sm:$0xf]
        %v478 = vld [vmem:[%s384 + $0x14] sm:$0xf]
        %v479 = vld [vmem:[%s384 + $0x18] sm:$0xf]
        %v480 = vld [vmem:[%s384 + $0x1c] sm:$0xf]
        %v481 = vld [vmem:[%s384 + $0x20] sm:$0xf]
        %v482 = vld [vmem:[%s384 + $0x24] sm:$0xf]
        %v483 = vld [vmem:[%s384 + $0x28] sm:$0xf]
        %v484 = vld [vmem:[%s384 + $0x2c] sm:$0xf]
        %v485 = vld [vmem:[%s384 + $0x30] sm:$0xf]
        %v486 = vld [vmem:[%s384 + $0x34] sm:$0xf]
        %v487 = vld [vmem:[%s384 + $0x38] sm:$0xf]
        %v488 = vld [vmem:[%s384 + $0x3c] sm:$0xf]
        %v489 = vunpack.c.l.bf16 %v473
        %v490 = vunpack.c.l.bf16 %v474
        %v491 = vunpack.c.l.bf16 %v475
        %v492 = vunpack.c.l.bf16 %v476
        %v493 = vunpack.c.l.bf16 %v477
        %v494 = vunpack.c.l.bf16 %v478
        %v495 = vunpack.c.l.bf16 %v479
        %v496 = vunpack.c.l.bf16 %v480
        %v497 = vunpack.c.l.bf16 %v481
        %v498 = vunpack.c.l.bf16 %v482
        %v499 = vunpack.c.l.bf16 %v483
        %v500 = vunpack.c.l.bf16 %v484
        %v501 = vunpack.c.l.bf16 %v485
        %v502 = vunpack.c.l.bf16 %v486
        %v503 = vunpack.c.l.bf16 %v487
        %v504 = vunpack.c.l.bf16 %v488
        %v505 = vld [vmem:[%s402] sm:$0xf]
        %v506 = vld [vmem:[%s402 + $0x4] sm:$0xf]
        %v507 = vld [vmem:[%s402 + $0x8] sm:$0xf]
        %v508 = vld [vmem:[%s402 + $0xc] sm:$0xf]
        %v509 = vld [vmem:[%s402 + $0x10] sm:$0xf]
        %v510 = vld [vmem:[%s402 + $0x14] sm:$0xf]
        %v511 = vld [vmem:[%s402 + $0x18] sm:$0xf]
        %v512 = vld [vmem:[%s402 + $0x1c] sm:$0xf]
        %v513 = vld [vmem:[%s402 + $0x20] sm:$0xf]
        %v514 = vld [vmem:[%s402 + $0x24] sm:$0xf]
        %v515 = vld [vmem:[%s402 + $0x28] sm:$0xf]
        %v516 = vld [vmem:[%s402 + $0x2c] sm:$0xf]
        %v517 = vld [vmem:[%s402 + $0x30] sm:$0xf]
        %v518 = vld [vmem:[%s402 + $0x34] sm:$0xf]
        %v519 = vld [vmem:[%s402 + $0x38] sm:$0xf]
        %v520 = vld [vmem:[%s402 + $0x3c] sm:$0xf]
        %v521 = vunpack.c.l.bf16 %v505
        %v522 = vunpack.c.l.bf16 %v506
        %v523 = vunpack.c.l.bf16 %v507
        %v524 = vunpack.c.l.bf16 %v508
        %v525 = vunpack.c.l.bf16 %v509
        %v526 = vunpack.c.l.bf16 %v510
        %v527 = vunpack.c.l.bf16 %v511
        %v528 = vunpack.c.l.bf16 %v512
        %v529 = vunpack.c.l.bf16 %v513
        %v530 = vunpack.c.l.bf16 %v514
        %v531 = vunpack.c.l.bf16 %v515
        %v532 = vunpack.c.l.bf16 %v516
        %v533 = vunpack.c.l.bf16 %v517
        %v534 = vunpack.c.l.bf16 %v518
        %v535 = vunpack.c.l.bf16 %v519
        %v536 = vunpack.c.l.bf16 %v520
        %v537 = vld [vmem:[%s411] sm:$0xf]
        %v538 = vld [vmem:[%s411 + $0x4] sm:$0xf]
        %v539 = vld [vmem:[%s411 + $0x8] sm:$0xf]
        %v540 = vld [vmem:[%s411 + $0xc] sm:$0xf]
        %v541 = vld [vmem:[%s411 + $0x10] sm:$0xf]
        %v542 = vld [vmem:[%s411 + $0x14] sm:$0xf]
        %v543 = vld [vmem:[%s411 + $0x18] sm:$0xf]
        %v544 = vld [vmem:[%s411 + $0x1c] sm:$0xf]
        %v545 = vld [vmem:[%s411 + $0x20] sm:$0xf]
        %v546 = vld [vmem:[%s411 + $0x24] sm:$0xf]
        %v547 = vld [vmem:[%s411 + $0x28] sm:$0xf]
        %v548 = vld [vmem:[%s411 + $0x2c] sm:$0xf]
        %v549 = vld [vmem:[%s411 + $0x30] sm:$0xf]
        %v550 = vld [vmem:[%s411 + $0x34] sm:$0xf]
        %v551 = vld [vmem:[%s411 + $0x38] sm:$0xf]
        %v552 = vld [vmem:[%s411 + $0x3c] sm:$0xf]
        %v553 = vunpack.c.l.bf16 %v537
        %v554 = vunpack.c.l.bf16 %v538
        %v555 = vunpack.c.l.bf16 %v539
        %v556 = vunpack.c.l.bf16 %v540
        %v557 = vunpack.c.l.bf16 %v541
        %v558 = vunpack.c.l.bf16 %v542
        %v559 = vunpack.c.l.bf16 %v543
        %v560 = vunpack.c.l.bf16 %v544
        %v561 = vunpack.c.l.bf16 %v545
        %v562 = vunpack.c.l.bf16 %v546
        %v563 = vunpack.c.l.bf16 %v547
        %v564 = vunpack.c.l.bf16 %v548
        %v565 = vunpack.c.l.bf16 %v549
        %v566 = vunpack.c.l.bf16 %v550
        %v567 = vunpack.c.l.bf16 %v551
        %v568 = vunpack.c.l.bf16 %v552
        %v569 = vld [vmem:[%s393] sm:$0xf]
        %v570 = vld [vmem:[%s393 + $0x4] sm:$0xf]
        %v571 = vld [vmem:[%s393 + $0x8] sm:$0xf]
        %v572 = vld [vmem:[%s393 + $0xc] sm:$0xf]
        %v573 = vld [vmem:[%s393 + $0x10] sm:$0xf]
        %v574 = vld [vmem:[%s393 + $0x14] sm:$0xf]
        %v575 = vld [vmem:[%s393 + $0x18] sm:$0xf]
        %v576 = vld [vmem:[%s393 + $0x1c] sm:$0xf]
        %v577 = vld [vmem:[%s393 + $0x20] sm:$0xf]
        %v578 = vld [vmem:[%s393 + $0x24] sm:$0xf]
        %v579 = vld [vmem:[%s393 + $0x28] sm:$0xf]
        %v580 = vld [vmem:[%s393 + $0x2c] sm:$0xf]
        %v581 = vld [vmem:[%s393 + $0x30] sm:$0xf]
        %v582 = vld [vmem:[%s393 + $0x34] sm:$0xf]
        %v583 = vld [vmem:[%s393 + $0x38] sm:$0xf]
        %v584 = vld [vmem:[%s393 + $0x3c] sm:$0xf]
        %v585 = vunpack.c.l.bf16 %v569
        %v586 = vunpack.c.l.bf16 %v570
        %v587 = vunpack.c.l.bf16 %v571
        %v588 = vunpack.c.l.bf16 %v572
        %v589 = vunpack.c.l.bf16 %v573
        %v590 = vunpack.c.l.bf16 %v574
        %v591 = vunpack.c.l.bf16 %v575
        %v592 = vunpack.c.l.bf16 %v576
        %v593 = vunpack.c.l.bf16 %v577
        %v594 = vunpack.c.l.bf16 %v578
        %v595 = vunpack.c.l.bf16 %v579
        %v596 = vunpack.c.l.bf16 %v580
        %v597 = vunpack.c.l.bf16 %v581
        %v598 = vunpack.c.l.bf16 %v582
        %v599 = vunpack.c.l.bf16 %v583
        %v600 = vunpack.c.l.bf16 %v584
        %v601 = vmax.f32 %v585, 0.0
        %v602 = vmax.f32 %v586, 0.0
        %v603 = vmax.f32 %v587, 0.0
        %v604 = vmax.f32 %v588, 0.0
        %v605 = vmax.f32 %v589, 0.0
        %v606 = vmax.f32 %v590, 0.0
        %v607 = vmax.f32 %v591, 0.0
        %v608 = vmax.f32 %v592, 0.0
        %v609 = vmax.f32 %v593, 0.0
        %v610 = vmax.f32 %v594, 0.0
        %v611 = vmax.f32 %v595, 0.0
        %v612 = vmax.f32 %v596, 0.0
        %v613 = vmax.f32 %v597, 0.0
        %v614 = vmax.f32 %v598, 0.0
        %v615 = vmax.f32 %v599, 0.0
        %v616 = vmax.f32 %v600, 0.0
        %vm617 = vcmp.ne.f32.partialorder %v585, %v585
        %vm618 = vcmp.ne.f32.partialorder %v586, %v586
        %vm619 = vcmp.ne.f32.partialorder %v587, %v587
        %vm620 = vcmp.ne.f32.partialorder %v588, %v588
        %vm621 = vcmp.ne.f32.partialorder %v589, %v589
        %vm622 = vcmp.ne.f32.partialorder %v590, %v590
        %vm623 = vcmp.ne.f32.partialorder %v591, %v591
        %vm624 = vcmp.ne.f32.partialorder %v592, %v592
        %vm625 = vcmp.ne.f32.partialorder %v593, %v593
        %vm626 = vcmp.ne.f32.partialorder %v594, %v594
        %vm627 = vcmp.ne.f32.partialorder %v595, %v595
        %vm628 = vcmp.ne.f32.partialorder %v596, %v596
        %vm629 = vcmp.ne.f32.partialorder %v597, %v597
        %vm630 = vcmp.ne.f32.partialorder %v598, %v598
        %vm631 = vcmp.ne.f32.partialorder %v599, %v599
        %vm632 = vcmp.ne.f32.partialorder %v600, %v600
        %v633 = vadd.f32 %v585, 0.0
        %v634 = vadd.f32 %v586, 0.0
        %v635 = vadd.f32 %v587, 0.0
        %v636 = vadd.f32 %v588, 0.0
        %v637 = vadd.f32 %v589, 0.0
        %v638 = vadd.f32 %v590, 0.0
        %v639 = vadd.f32 %v591, 0.0
        %v640 = vadd.f32 %v592, 0.0
        %v641 = vadd.f32 %v593, 0.0
        %v642 = vadd.f32 %v594, 0.0
        %v643 = vadd.f32 %v595, 0.0
        %v644 = vadd.f32 %v596, 0.0
        %v645 = vadd.f32 %v597, 0.0
        %v646 = vadd.f32 %v598, 0.0
        %v647 = vadd.f32 %v599, 0.0
        %v648 = vadd.f32 %v600, 0.0
        %v649 = vand.u32 2147483647, %v585
        %v650 = vand.u32 2147483647, %v586
        %v651 = vand.u32 2147483647, %v587
        %v652 = vand.u32 2147483647, %v588
        %v653 = vand.u32 2147483647, %v589
        %v654 = vand.u32 2147483647, %v590
        %v655 = vand.u32 2147483647, %v591
        %v656 = vand.u32 2147483647, %v592
        %v657 = vand.u32 2147483647, %v593
        %v658 = vand.u32 2147483647, %v594
        %v659 = vand.u32 2147483647, %v595
        %v660 = vand.u32 2147483647, %v596
        %v661 = vand.u32 2147483647, %v597
        %v662 = vand.u32 2147483647, %v598
        %v663 = vand.u32 2147483647, %v599
        %v664 = vand.u32 2147483647, %v600
        %v665 = vsub.f32 0.0, %v649
        %v666 = vsub.f32 0.0, %v650
        %v667 = vsub.f32 0.0, %v651
        %v668 = vsub.f32 0.0, %v652
        %v669 = vsub.f32 0.0, %v653
        %v670 = vsub.f32 0.0, %v654
        %v671 = vsub.f32 0.0, %v655
        %v672 = vsub.f32 0.0, %v656
        %v673 = vsub.f32 0.0, %v657
        %v674 = vsub.f32 0.0, %v658
        %v675 = vsub.f32 0.0, %v659
        %v676 = vsub.f32 0.0, %v660
        %v677 = vsub.f32 0.0, %v661
        %v678 = vsub.f32 0.0, %v662
        %v679 = vsub.f32 0.0, %v663
        %v680 = vsub.f32 0.0, %v664
        %v681 = vmul.f32 %v665, 1.442695
        %v682 = vpow.pop %v681
        %v683 = vmul.f32 %v666, 1.442695
        %v684 = vpow.pop %v683
        %v685 = vmul.f32 %v667, 1.442695
        %v686 = vpow.pop %v685
        %v687 = vmul.f32 %v668, 1.442695
        %v688 = vpow.pop %v687
        %v689 = vmul.f32 %v669, 1.442695
        %v690 = vpow.pop %v689
        %v691 = vmul.f32 %v670, 1.442695
        %v692 = vpow.pop %v691
        %v693 = vmul.f32 %v671, 1.442695
        %v694 = vpow.pop %v693
        %v695 = vmul.f32 %v672, 1.442695
        %v696 = vpow.pop %v695
        %v697 = vmul.f32 %v673, 1.442695
        %v698 = vpow.pop %v697
        %v699 = vmul.f32 %v674, 1.442695
        %v700 = vpow.pop %v699
        %v701 = vmul.f32 %v675, 1.442695
        %v702 = vpow.pop %v701
        %v703 = vmul.f32 %v676, 1.442695
        %v704 = vpow.pop %v703
        %v705 = vmul.f32 %v677, 1.442695
        %v706 = vpow.pop %v705
        %v707 = vmul.f32 %v678, 1.442695
        %v708 = vpow.pop %v707
        %v709 = vmul.f32 %v679, 1.442695
        %v710 = vpow.pop %v709
        %v711 = vmul.f32 %v680, 1.442695
        %v712 = vpow.pop %v711
        %v713 = vadd.f32 %v682, 1.0
        %v714 = vlog2.pop %v713
        %v715 = vmul.f32 %v714, 0.6931472
        %v716 = vmul.f32 -0.5, %v682
        %v717 = vadd.f32 %v716, 1.0
        %v718 = vmul.f32 %v717, %v682
        %v719 = vand.u32 2147483647, %v682
        %vm720 = vcmp.lt.f32.partialorder %v719, 0.0004427343
        %v721 = vsel %vm720, %v718, %v715
        %v722 = vadd.f32 %v684, 1.0
        %v723 = vlog2.pop %v722
        %v724 = vmul.f32 %v723, 0.6931472
        %v725 = vmul.f32 -0.5, %v684
        %v726 = vadd.f32 %v725, 1.0
        %v727 = vmul.f32 %v726, %v684
        %v728 = vand.u32 2147483647, %v684
        %vm729 = vcmp.lt.f32.partialorder %v728, 0.0004427343
        %v730 = vsel %vm729, %v727, %v724
        %v731 = vadd.f32 %v686, 1.0
        %v732 = vlog2.pop %v731
        %v733 = vmul.f32 %v732, 0.6931472
        %v734 = vmul.f32 -0.5, %v686
        %v735 = vadd.f32 %v734, 1.0
        %v736 = vmul.f32 %v735, %v686
        %v737 = vand.u32 2147483647, %v686
        %vm738 = vcmp.lt.f32.partialorder %v737, 0.0004427343
        %v739 = vsel %vm738, %v736, %v733
        %v740 = vadd.f32 %v688, 1.0
        %v741 = vlog2.pop %v740
        %v742 = vmul.f32 %v741, 0.6931472
        %v743 = vmul.f32 -0.5, %v688
        %v744 = vadd.f32 %v743, 1.0
        %v745 = vmul.f32 %v744, %v688
        %v746 = vand.u32 2147483647, %v688
        %vm747 = vcmp.lt.f32.partialorder %v746, 0.0004427343
        %v748 = vsel %vm747, %v745, %v742
        %v749 = vadd.f32 %v690, 1.0
        %v750 = vlog2.pop %v749
        %v751 = vmul.f32 %v750, 0.6931472
        %v752 = vmul.f32 -0.5, %v690
        %v753 = vadd.f32 %v752, 1.0
        %v754 = vmul.f32 %v753, %v690
        %v755 = vand.u32 2147483647, %v690
        %vm756 = vcmp.lt.f32.partialorder %v755, 0.0004427343
        %v757 = vsel %vm756, %v754, %v751
        %v758 = vadd.f32 %v692, 1.0
        %v759 = vlog2.pop %v758
        %v760 = vmul.f32 %v759, 0.6931472
        %v761 = vmul.f32 -0.5, %v692
        %v762 = vadd.f32 %v761, 1.0
        %v763 = vmul.f32 %v762, %v692
        %v764 = vand.u32 2147483647, %v692
        %vm765 = vcmp.lt.f32.partialorder %v764, 0.0004427343
        %v766 = vsel %vm765, %v763, %v760
        %v767 = vadd.f32 %v694, 1.0
        %v768 = vlog2.pop %v767
        %v769 = vmul.f32 %v768, 0.6931472
        %v770 = vmul.f32 -0.5, %v694
        %v771 = vadd.f32 %v770, 1.0
        %v772 = vmul.f32 %v771, %v694
        %v773 = vand.u32 2147483647, %v694
        %vm774 = vcmp.lt.f32.partialorder %v773, 0.0004427343
        %v775 = vsel %vm774, %v772, %v769
        %v776 = vadd.f32 %v696, 1.0
        %v777 = vlog2.pop %v776
        %v778 = vmul.f32 %v777, 0.6931472
        %v779 = vmul.f32 -0.5, %v696
        %v780 = vadd.f32 %v779, 1.0
        %v781 = vmul.f32 %v780, %v696
        %v782 = vand.u32 2147483647, %v696
        %vm783 = vcmp.lt.f32.partialorder %v782, 0.0004427343
        %v784 = vsel %vm783, %v781, %v778
        %v785 = vadd.f32 %v698, 1.0
        %v786 = vlog2.pop %v785
        %v787 = vmul.f32 %v786, 0.6931472
        %v788 = vmul.f32 -0.5, %v698
        %v789 = vadd.f32 %v788, 1.0
        %v790 = vmul.f32 %v789, %v698
        %v791 = vand.u32 2147483647, %v698
        %vm792 = vcmp.lt.f32.partialorder %v791, 0.0004427343
        %v793 = vsel %vm792, %v790, %v787
        %v794 = vadd.f32 %v700, 1.0
        %v795 = vlog2.pop %v794
        %v796 = vmul.f32 %v795, 0.6931472
        %v797 = vmul.f32 -0.5, %v700
        %v798 = vadd.f32 %v797, 1.0
        %v799 = vmul.f32 %v798, %v700
        %v800 = vand.u32 2147483647, %v700
        %vm801 = vcmp.lt.f32.partialorder %v800, 0.0004427343
        %v802 = vsel %vm801, %v799, %v796
        %v803 = vadd.f32 %v702, 1.0
        %v804 = vlog2.pop %v803
        %v805 = vmul.f32 %v804, 0.6931472
        %v806 = vmul.f32 -0.5, %v702
        %v807 = vadd.f32 %v806, 1.0
        %v808 = vmul.f32 %v807, %v702
        %v809 = vand.u32 2147483647, %v702
        %vm810 = vcmp.lt.f32.partialorder %v809, 0.0004427343
        %v811 = vsel %vm810, %v808, %v805
        %v812 = vadd.f32 %v704, 1.0
        %v813 = vlog2.pop %v812
        %v814 = vmul.f32 %v813, 0.6931472
        %v815 = vmul.f32 -0.5, %v704
        %v816 = vadd.f32 %v815, 1.0
        %v817 = vmul.f32 %v816, %v704
        %v818 = vand.u32 2147483647, %v704
        %vm819 = vcmp.lt.f32.partialorder %v818, 0.0004427343
        %v820 = vsel %vm819, %v817, %v814
        %v821 = vadd.f32 %v706, 1.0
        %v822 = vlog2.pop %v821
        %v823 = vmul.f32 %v822, 0.6931472
        %v824 = vmul.f32 -0.5, %v706
        %v825 = vadd.f32 %v824, 1.0
        %v826 = vmul.f32 %v825, %v706
        %v827 = vand.u32 2147483647, %v706
        %vm828 = vcmp.lt.f32.partialorder %v827, 0.0004427343
        %v829 = vsel %vm828, %v826, %v823
        %v830 = vadd.f32 %v708, 1.0
        %v831 = vlog2.pop %v830
        %v832 = vmul.f32 %v831, 0.6931472
        %v833 = vmul.f32 -0.5, %v708
        %v834 = vadd.f32 %v833, 1.0
        %v835 = vmul.f32 %v834, %v708
        %v836 = vand.u32 2147483647, %v708
        %vm837 = vcmp.lt.f32.partialorder %v836, 0.0004427343
        %v838 = vsel %vm837, %v835, %v832
        %v839 = vadd.f32 %v710, 1.0
        %v840 = vlog2.pop %v839
        %v841 = vmul.f32 %v840, 0.6931472
        %v842 = vmul.f32 -0.5, %v710
        %v843 = vadd.f32 %v842, 1.0
        %v844 = vmul.f32 %v843, %v710
        %v845 = vand.u32 2147483647, %v710
        %vm846 = vcmp.lt.f32.partialorder %v845, 0.0004427343
        %v847 = vsel %vm846, %v844, %v841
        %v848 = vadd.f32 %v712, 1.0
        %v849 = vlog2.pop %v848
        %v850 = vmul.f32 %v849, 0.6931472
        %v851 = vmul.f32 -0.5, %v712
        %v852 = vadd.f32 %v851, 1.0
        %v853 = vmul.f32 %v852, %v712
        %v854 = vand.u32 2147483647, %v712
        %vm855 = vcmp.lt.f32.partialorder %v854, 0.0004427343
        %v856 = vsel %vm855, %v853, %v850
        %v857 = vadd.f32 %v601, %v721
        %v858 = vadd.f32 %v602, %v730
        %v859 = vadd.f32 %v603, %v739
        %v860 = vadd.f32 %v604, %v748
        %v861 = vadd.f32 %v605, %v757
        %v862 = vadd.f32 %v606, %v766
        %v863 = vadd.f32 %v607, %v775
        %v864 = vadd.f32 %v608, %v784
        %v865 = vadd.f32 %v609, %v793
        %v866 = vadd.f32 %v610, %v802
        %v867 = vadd.f32 %v611, %v811
        %v868 = vadd.f32 %v612, %v820
        %v869 = vadd.f32 %v613, %v829
        %v870 = vadd.f32 %v614, %v838
        %v871 = vadd.f32 %v615, %v847
        %v872 = vadd.f32 %v616, %v856
        %v873 = vsel %vm617, %v633, %v857
        %v874 = vsel %vm618, %v634, %v858
        %v875 = vsel %vm619, %v635, %v859
        %v876 = vsel %vm620, %v636, %v860
        %v877 = vsel %vm621, %v637, %v861
        %v878 = vsel %vm622, %v638, %v862
        %v879 = vsel %vm623, %v639, %v863
        %v880 = vsel %vm624, %v640, %v864
        %v881 = vsel %vm625, %v641, %v865
        %v882 = vsel %vm626, %v642, %v866
        %v883 = vsel %vm627, %v643, %v867
        %v884 = vsel %vm628, %v644, %v868
        %v885 = vsel %vm629, %v645, %v869
        %v886 = vsel %vm630, %v646, %v870
        %v887 = vsel %vm631, %v647, %v871
        %v888 = vsel %vm632, %v648, %v872
        %v889 = vmul.f32 %v489, %v521
        %v890 = vmul.f32 %v490, %v522
        %v891 = vmul.f32 %v491, %v523
        %v892 = vmul.f32 %v492, %v524
        %v893 = vmul.f32 %v493, %v525
        %v894 = vmul.f32 %v494, %v526
        %v895 = vmul.f32 %v495, %v527
        %v896 = vmul.f32 %v496, %v528
        %v897 = vmul.f32 %v497, %v529
        %v898 = vmul.f32 %v498, %v530
        %v899 = vmul.f32 %v499, %v531
        %v900 = vmul.f32 %v500, %v532
        %v901 = vmul.f32 %v501, %v533
        %v902 = vmul.f32 %v502, %v534
        %v903 = vmul.f32 %v503, %v535
        %v904 = vmul.f32 %v504, %v536
        %v905 = vmul.f32 %v873, %v553
        %v906 = vmul.f32 %v874, %v554
        %v907 = vmul.f32 %v875, %v555
        %v908 = vmul.f32 %v876, %v556
        %v909 = vmul.f32 %v877, %v557
        %v910 = vmul.f32 %v878, %v558
        %v911 = vmul.f32 %v879, %v559
        %v912 = vmul.f32 %v880, %v560
        %v913 = vmul.f32 %v881, %v561
        %v914 = vmul.f32 %v882, %v562
        %v915 = vmul.f32 %v883, %v563
        %v916 = vmul.f32 %v884, %v564
        %v917 = vmul.f32 %v885, %v565
        %v918 = vmul.f32 %v886, %v566
        %v919 = vmul.f32 %v887, %v567
        %v920 = vmul.f32 %v888, %v568
        %v921 = vadd.f32 %v889, %v905
        %v922 = vadd.f32 %v890, %v906
        %v923 = vadd.f32 %v891, %v907
        %v924 = vadd.f32 %v892, %v908
        %v925 = vadd.f32 %v893, %v909
        %v926 = vadd.f32 %v894, %v910
        %v927 = vadd.f32 %v895, %v911
        %v928 = vadd.f32 %v896, %v912
        %v929 = vadd.f32 %v897, %v913
        %v930 = vadd.f32 %v898, %v914
        %v931 = vadd.f32 %v899, %v915
        %v932 = vadd.f32 %v900, %v916
        %v933 = vadd.f32 %v901, %v917
        %v934 = vadd.f32 %v902, %v918
        %v935 = vadd.f32 %v903, %v919
        %v936 = vadd.f32 %v904, %v920
        %v937 = vpack.c.bf16 %v922, %v921
        %v938 = vpack.c.bf16 %v924, %v923
        %v939 = vpack.c.bf16 %v926, %v925
        %v940 = vpack.c.bf16 %v928, %v927
        %v941 = vpack.c.bf16 %v930, %v929
        %v942 = vpack.c.bf16 %v932, %v931
        %v943 = vpack.c.bf16 %v934, %v933
        %v944 = vpack.c.bf16 %v936, %v935
        %v945 = vld [vmem:[%s375] sm:$0xf]
        %v946 = vld [vmem:[%s375 + $0x4] sm:$0xf]
        %v949 = vunpack.c.l.b16 %v945
        %v950 = vunpack.c.l.b16 %v946
        %v951 = vpack.c.b16 %v950, %v949
        %953 = vmatprep.subr.bf16.mxu0 0
        %954 = vmatpush1.bf16.msra.mxu0 %v937
        %955 = vmatprep.subr.bf16.mxu0 0
        %956 = vmatpush1.bf16.msra.mxu0 %v938
        %957 = vmatprep.subr.bf16.mxu0 0
        %958 = vmatpush1.bf16.msra.mxu0 %v939
        %959 = vmatprep.subr.bf16.mxu0 0
        %960 = vmatpush1.bf16.msra.mxu0 %v940
        %961 = vmatprep.subr.bf16.mxu0 0
        %962 = vmatpush1.bf16.msra.mxu0 %v941
        %963 = vmatprep.subr.bf16.mxu0 0
        %964 = vmatpush1.bf16.msra.mxu0 %v942
        %965 = vmatprep.subr.bf16.mxu0 0
        %966 = vmatpush1.bf16.msra.mxu0 %v943
        %967 = vmatprep.subr.bf16.mxu0 0
        %968 = vmatpush1.bf16.msra.mxu0 %v944
        %969 = vmatprep.subr.bf16.mxu0 0
        %970 = vmatpush1.bf16.msra.mxu0 0
        %971 = vmatprep.subr.bf16.mxu0 0
        %972 = vmatpush1.bf16.msra.mxu0 0
        %973 = vmatprep.subr.bf16.mxu0 0
        %974 = vmatpush1.bf16.msra.mxu0 0
        %975 = vmatprep.subr.bf16.mxu0 0
        %976 = vmatpush1.bf16.msra.mxu0 0
        %977 = vmatprep.subr.bf16.mxu0 0
        %978 = vmatpush1.bf16.msra.mxu0 0
        %979 = vmatprep.subr.bf16.mxu0 0
        %980 = vmatpush1.bf16.msra.mxu0 0
        %981 = vmatprep.subr.bf16.mxu0 0
        %982 = vmatpush1.bf16.msra.mxu0 0
        %983 = vmatprep.subr.bf16.mxu0 0
        %984 = vmatpush1.bf16.msra.mxu0 0
        %985 = vmatprep.mubr.bf16.mxu0 0
        %986 = vmatmul.mubr.bf16.gmra.mrb[0].mxu0 %v951
        %v987 = vpop.f32.mrb[0].mxu0
        %v988 = vadd.f32 0.0, %v987
        %v989 = vpop.f32.mrb[0].mxu0
        %v990 = vpop.f32.mrb[0].mxu0
        %v991 = vadd.f32 0.0, %v990
        %v992 = vpop.f32.mrb[0].mxu0
        %993 = vdwg.mxu0
        %p994 = scmp.eq.s32.totalorder %s34, 0
        // Predicated region
        $region65: #{tpu_custom_call.1} parent=43 // pred_check
          %p995 = pneg %p994
        $region66: #{tpu_custom_call.1} parent=43 // pred_check_branch
          %997 = sbr.rel (%p995) target = $region68
        $region67: #{tpu_custom_call.1} parent=43 // pred_region
          %998 = vst [vmem:[%s463] sm:$0xff] %v988
          %999 = vst [vmem:[%s463 + $0x8] sm:$0xff] %v991
        $region68: #{tpu_custom_call.1} parent=43 // pred_fallthru
          _
        %p1000 = scmp.gt.s32.totalorder %s34, 0
        // Predicated region
        $region69: #{tpu_custom_call.1} parent=43 // pred_check
          %p1001 = pneg %p1000
        $region70: #{tpu_custom_call.1} parent=43 // pred_check_branch
          %1003 = sbr.rel (%p1001) target = $region72
        $region71: #{tpu_custom_call.1} parent=43 // pred_region
          %v1004 = vld [vmem:[%s463] sm:$0xff]
          %v1005 = vld [vmem:[%s463 + $0x8] sm:$0xff]
          %v1006 = vadd.f32 %v1004, %v988
          %v1007 = vadd.f32 %v1005, %v991
          %1008 = vst [vmem:[%s463] sm:$0xff] %v1006
          %1009 = vst [vmem:[%s463 + $0x8] sm:$0xff] %v1007
        $region72: #{tpu_custom_call.1} parent=43 // pred_fallthru
          _
        %p1010 = scmp.eq.s32.totalorder %s34, 1
        // Predicated region
        $region73: #{tpu_custom_call.1} parent=43 // pred_check
          %p1011 = pneg %p1010
        $region74: #{tpu_custom_call.1} parent=43 // pred_check_branch
          %1013 = sbr.rel (%p1011) target = $region76
        $region75: #{tpu_custom_call.1} parent=43 // pred_region
          %v1014 = vld [vmem:[%s471] sm:$0x1]
          %v1015 = vld [vmem:[%s471 + $0x2] sm:$0x1]
          %v1016 = vmul.f32 %v1014, %v1015
          %v1017 = vld [vmem:[%s471 + $0x1] sm:$0x1]
          %v1018 = vmax.f32 %v1017, 0.0
          %vm1019 = vcmp.ne.f32.partialorder %v1017, %v1017
          %v1020 = vadd.f32 %v1017, 0.0
          %v1021 = vand.u32 2147483647, %v1017
          %v1022 = vsub.f32 0.0, %v1021
          %v1023 = vmul.f32 %v1022, 1.442695
          %v1024 = vpow.pop %v1023
          %v1025 = vadd.f32 %v1024, 1.0
          %v1026 = vlog2.pop %v1025
          %v1027 = vmul.f32 %v1026, 0.6931472
          %v1028 = vmul.f32 -0.5, %v1024
          %v1029 = vadd.f32 %v1028, 1.0
          %v1030 = vmul.f32 %v1029, %v1024
          %v1031 = vand.u32 2147483647, %v1024
          %vm1032 = vcmp.lt.f32.partialorder %v1031, 0.0004427343
          %v1033 = vsel %vm1032, %v1030, %v1027
          %v1034 = vadd.f32 %v1018, %v1033
          %v1035 = vsel %vm1019, %v1020, %v1034
          %v1036 = vld [vmem:[%s471 + $0x3] sm:$0x1]
          %v1037 = vmul.f32 %v1035, %v1036
          %v1038 = vadd.f32 %v1016, %v1037
          %v1039 = vld [vmem:[%s463] sm:$0xff]
          %v1040 = vld [vmem:[%s463 + $0x8] sm:$0xff]
          %v1041 = vlaneseq
          %v1042 = vshrl.u32 %v1041, 7
          %v1043 = vsub.s32 0, %v1042
          %v1044 = vrot.slane %v1038, %v1043
          %v1045 = vadd.f32 %v1039, %v1044
          %v1046 = vadd.f32 %v1040, %v1044
          %1047 = vst [vmem:[%s463] sm:$0xff] %v1045
          %1048 = vst [vmem:[%s463 + $0x8] sm:$0xff] %v1046
        $region76: #{tpu_custom_call.1} parent=43 // pred_fallthru
          _
        %s1049 = sand.u32 %s213, 1
        %s1050 = scalar_lea.sflag [#allocation4], %s1049
        %s1051 = sand.u32 %s213, 1
        %s1052 = smul.addr %s1051, 16
        %s1053 = scalar_lea.vmem [#allocation11], %s1052
        // Predicated region
        $region77: #{tpu_custom_call.1} parent=43 // pred_check
          %p1054 = pneg %p223
        $region78: #{tpu_custom_call.1} parent=43 // pred_check_branch
          %1056 = sbr.rel (%p1054) target = $region80
        $region79: #{tpu_custom_call.1} parent=43 // pred_region
          %s1058 = ssub.s32 256, 256
          %1059 = vsyncadd %s1050, %s1058
          %s1060 = smul.addr %s33, 128
          %s1061 = scalar_lea.hbm %s6, %s1060
          %s1062 = sshll.u32 %s1053, 4
          %s1063 = int_to_ptr.vmem [resolvable:$true] %s1062
          %1068 = dma.vmem_to_hbm [thread:$0]  %s1063, 256, %s1061, %s1050, 128, 256, 8
        $region80: #{tpu_custom_call.1} parent=43 // pred_fallthru
          _
      $region44: #{tpu_custom_call.1} parent=5 // pred_fallthru
        _
      %p1069 = scmp.le.s32.totalorder 2, %s24
      // Predicated region
      $region81: #{tpu_custom_call.1} parent=5 // pred_check
        %p1070 = pneg %p1069
      $region82: #{tpu_custom_call.1} parent=5 // pred_check_branch
        %1072 = sbr.rel (%p1070) target = $region84
      $region83: #{tpu_custom_call.1} parent=5 // pred_region
        %s1073 = ssub.s32 %s24, 2
        // Predicated region
        $region85: #{tpu_custom_call.1} parent=83 // pred_check
          %p1074 = pneg %p229
        $region86: #{tpu_custom_call.1} parent=83 // pred_check_branch
          %1076 = sbr.rel (%p1074) target = $region88
        $region87: #{tpu_custom_call.1} parent=83 // pred_region
          %s1077 = sand.u32 %s214, 1
          %s1078 = scalar_lea.sflag [#allocation4], %s1077
          %s1079 = sand.u32 %s214, 1
          %s1080 = smul.addr %s1079, 16
          %s1081 = scalar_lea.vmem [#allocation11], %s1080
          %1082 = dma.done %s1078, 256
        $region88: #{tpu_custom_call.1} parent=83 // pred_fallthru
          _
      $region84: #{tpu_custom_call.1} parent=5 // pred_fallthru
        _
    $region6: #{tpu_custom_call.1} parent=1 // loop_footer
      %s28 = sadd.s32 1, %s24
    $region7: #{tpu_custom_call.1} parent=1 // loop_footer_branch
      %23 = sbr.rel target = $region3
    $region8: #{tpu_custom_call.1} parent=1 // loop_exit
      _
    %1083 = vsyncpa [#allocation3], 1
    %s1084 = scalar_lea.sflag [#allocation3], 1
    %1085 = vsyncpa %s1084, 1
    %1086 = vsyncpa [#allocation6], 1
    %s1087 = scalar_lea.sflag [#allocation6], 1
    %1088 = vsyncpa %s1087, 1
    %1089 = vsyncpa [#allocation9], 1
    %s1090 = scalar_lea.sflag [#allocation9], 1
    %1091 = vsyncpa %s1090, 1
    %1092 = vsyncpa [#allocation4], 1
    %s1093 = scalar_lea.sflag [#allocation4], 1
    %1094 = vsyncpa %s1093, 1

</llo_original>
